<compile_context>
chip_gen: v7x
topology: tpu7x:2x2x1
jax: 0.10.0
libtpu: 0.0.40
codegen_flags: <defaults>
</compile_context>

<pallas_src>
import jax
import jax.numpy as jnp
from jax.experimental import pallas as pl
from jax.experimental.pallas import tpu as pltpu

BN_EPS = 1e-5
LANE = 128
SUBLANE = 8


# ---------------------------------------------------------------------------
# Kernels
# ---------------------------------------------------------------------------
def pool_embed_kernel(x_ref, w_ref, b_ref, o_ref):
    # x_ref: (bt, HW, C)   backbone feature maps (spatial on sublanes, channels
    #                      on lanes) -- DMA-pipelined per batch tile.
    # w_ref: (C, E_pad)    embed weight, pre-transposed, pre-scaled by 1/HW.
    # b_ref: (1, E_pad)    embed bias, zero-padded.
    # o_ref: (bt, E_pad)   pooled + Linear output for this tile.
    #
    # AdaptiveAvgPool2d((1,1)) + view(B,-1): sum over the spatial (sublane)
    # axis with the f32 upcast fused into the reduction (no full f32 copy of
    # the bf16 tile); the 1/HW scale lives in w_ref.
    pooled = jnp.sum(x_ref[...], axis=1, dtype=jnp.float32)         # (bt, C)
    # Linear: MXU matmul with f32 accumulation, lane-dense output.
    feats = jnp.dot(pooled, w_ref[...],
                    preferred_element_type=jnp.float32)             # (bt, E_pad)
    o_ref[...] = (feats + b_ref[...]).astype(o_ref.dtype)


def batchnorm1d_kernel(x_ref, gamma_ref, beta_ref, o_ref):
    # BatchNorm1d train-mode semantics: biased batch statistics over dim 0.
    # Tiny (B, E_pad) block -- single ungridded epilogue kernel.
    x = x_ref[...].astype(jnp.float32)
    mu = jnp.mean(x, axis=0, keepdims=True)                         # (1, E_pad)
    var = jnp.mean((x - mu) ** 2, axis=0, keepdims=True)            # (1, E_pad)
    norm = (x - mu) * jax.lax.rsqrt(var + BN_EPS)
    o_ref[...] = (gamma_ref[...] * norm + beta_ref[...]).astype(o_ref.dtype)


# ---------------------------------------------------------------------------
# VMEM-aware tiling helpers
# ---------------------------------------------------------------------------
def _round_up(x, m):
    return pl.cdiv(x, m) * m


def _dtype_sublane(dtype):
    # f32 tiles are (8, 128); bf16 packs two rows per sublane -> (16, 128).
    return max(SUBLANE, 32 // jnp.dtype(dtype).itemsize)


def _padded_tile_bytes(rows, sublanes, lanes, dtype):
    """Actual VMEM footprint of a (rows, sublanes, lanes) block after (sub)lane
    padding, for an arbitrary leading dim `rows` (no padding on leading dims)."""
    it = jnp.dtype(dtype).itemsize
    return (rows
            * _round_up(sublanes, _dtype_sublane(dtype))
            * _round_up(lanes, LANE)
            * it)


def _vmem_limit_bytes():
    """Generation-aware scoped-VMEM limit (128 MiB on v5e/v6e, 64 MiB on v7x)."""
    try:
        cap = pltpu.get_tpu_info().vmem_capacity_bytes
    except Exception:
        cap = 64 * 1024 * 1024
    return int(min(cap * 3 // 4, 96 * 1024 * 1024))


def _pick_batch_tile(n_rows, hw, c, x_dtype, e_pad, vmem_limit):
    """Largest multiple-of-8 batch tile whose *padded* double-buffered blocks
    (feature-map input + output) plus the resident weight/bias buffers fit
    under `vmem_limit`, while keeping >=4 grid steps when the batch allows."""
    # Resident buffers (constant index_map; budget the default 2 buffers each).
    resident = 2 * _padded_tile_bytes(1, c, e_pad, jnp.float32)      # weight
    resident += 2 * _padded_tile_bytes(1, 1, e_pad, jnp.float32)     # bias
    headroom = 2 * 1024 * 1024                                       # scratch/sems
    avail = max(vmem_limit - resident - headroom, SUBLANE)

    # Per batch row: double-buffered feature-map block + double-buffered output.
    per_row = 2 * _padded_tile_bytes(1, hw, c, x_dtype)
    per_row += 2 * e_pad * 4
    bt = max(SUBLANE, (avail // per_row) // SUBLANE * SUBLANE)

    # Keep >=4 grid steps when possible (pipeline overlap on a single TC, and
    # >=2 steps per TensorCore once the "parallel" axis shards on v7x).
    if n_rows >= 4 * SUBLANE:
        bt = min(bt, max(SUBLANE, (n_rows // 4) // SUBLANE * SUBLANE))
    bt = min(bt, _round_up(n_rows, SUBLANE))   # never exceed the (padded) batch
    bt = min(bt, 512)                          # M beyond this doesn't help the MXU
    return int(bt)


# ---------------------------------------------------------------------------
# Wrapper
# ---------------------------------------------------------------------------
def encoder_cnn_forward(feat_nchw, w_embed, b_embed, gamma, beta, *, b_tile=None):
    """Post-backbone EncoderCNN forward.

    feat_nchw: (B, C, H, W) backbone feature maps (f32 or bf16).
    w_embed:   (E, C) PyTorch Linear weight; b_embed/gamma/beta: (E,).
    Returns (B, E) float32 features.
    """
    B, C, H, W = feat_nchw.shape
    E = w_embed.shape[0]
    HW = H * W

    # Lane-dense layout: channels on the 128-lane axis, spatial on sublanes.
    # TODO(synk): if the backbone emits NHWC activations this transpose is free.
    x = jnp.transpose(feat_nchw, (0, 2, 3, 1)).reshape(B, HW, C)

    # Lane-dense embed dimension: zero-pad E up to a multiple of 128.
    E_pad = _round_up(E, LANE)
    pad_e = E_pad - E
    # Fold the 1/HW average-pool scale into the resident weight (loaded once).
    w_t = jnp.pad(jnp.transpose(w_embed).astype(jnp.float32) * (1.0 / HW),
                  ((0, 0), (0, pad_e)))
    b2 = jnp.pad(b_embed.astype(jnp.float32).reshape(1, E), ((0, 0), (0, pad_e)))
    g2 = jnp.pad(gamma.astype(jnp.float32).reshape(1, E), ((0, 0), (0, pad_e)))
    be2 = jnp.pad(beta.astype(jnp.float32).reshape(1, E), ((0, 0), (0, pad_e)))

    # Padding-aware, generation-aware batch tile; pad B to whole tiles.
    vmem_limit = _vmem_limit_bytes()
    bt = b_tile if b_tile is not None else _pick_batch_tile(
        B, HW, C, x.dtype, E_pad, vmem_limit)
    B_pad = _round_up(B, bt)
    if B_pad != B:
        x = jnp.pad(x, ((0, B_pad - B), (0, 0), (0, 0)))

    # Stage 1: gridded, pipelined pool + Linear (batch axis is megacore-parallel).
    feats = pl.pallas_call(
        pool_embed_kernel,
        out_shape=jax.ShapeDtypeStruct((B_pad, E_pad), jnp.float32),
        grid=(B_pad // bt,),
        in_specs=[
            pl.BlockSpec((bt, HW, C), lambda b: (b, 0, 0)),   # pipelined features
            pl.BlockSpec((C, E_pad), lambda b: (0, 0)),       # resident weight
            pl.BlockSpec((1, E_pad), lambda b: (0, 0)),       # resident bias
        ],
        out_specs=pl.BlockSpec((bt, E_pad), lambda b: (b, 0)),
        compiler_params=pltpu.CompilerParams(
            dimension_semantics=("parallel",),
            vmem_limit_bytes=vmem_limit),
    )(x, w_t, b2)

    # Drop batch padding before the batch-coupled BatchNorm.
    feats = feats[:B]

    # Stage 2: BatchNorm1d over the full batch (tiny, single block).
    vmem = pltpu.MemorySpace.VMEM
    out = pl.pallas_call(
        batchnorm1d_kernel,
        out_shape=jax.ShapeDtypeStruct((B, E_pad), jnp.float32),
        in_specs=[pl.BlockSpec(memory_space=vmem)] * 3,
        out_specs=pl.BlockSpec(memory_space=vmem),
    )(feats, g2, be2)

    return out[:, :E]


def reference_forward(feat_nchw, w_embed, b_embed, gamma, beta):
    """Pure-JAX reference mirroring the PyTorch forward (post-backbone)."""
    pooled = jnp.mean(feat_nchw.astype(jnp.float32), axis=(2, 3))  # avgpool+view
    feats = pooled @ w_embed.T + b_embed                           # Linear
    mu = jnp.mean(feats, axis=0, keepdims=True)                    # BatchNorm1d
    var = jnp.mean((feats - mu) ** 2, axis=0, keepdims=True)
    return gamma * (feats - mu) / jnp.sqrt(var + BN_EPS) + beta


if __name__ == "__main__":
    # TODO(synk): the pretrained 152-layer ResNet conv backbone has no clean
    # Pallas equivalent (frozen pretrained weights); the kernels consume its
    # output feature maps directly.
    B, C, H, W = 16, 256, 4, 4      # small stand-in for ResNet-152's (B, 2048, 7, 7)
    E = 32                          # embed_size

    key = jax.random.PRNGKey(0)
    k_x, k_w, k_b = jax.random.split(key, 3)
    feat_maps = jax.random.normal(k_x, (B, C, H, W), dtype=jnp.float32)
    # Carry backbone activations in bf16 (halves HBM traffic of the dominant read).
    feat_maps_bf16 = feat_maps.astype(jnp.bfloat16)
    w_embed = jax.random.normal(k_w, (E, C), dtype=jnp.float32) * (1.0 / C ** 0.5)
    b_embed = jax.random.normal(k_b, (E,), dtype=jnp.float32) * 0.01
    gamma = jnp.ones((E,), dtype=jnp.float32)   # BatchNorm1d default init
    beta = jnp.zeros((E,), dtype=jnp.float32)

    # b_tile=8 -> grid of 2 batch tiles, exercising the pipelined path.
    out = encoder_cnn_forward(feat_maps_bf16, w_embed, b_embed, gamma, beta,
                              b_tile=8)
    out = jax.block_until_ready(out)

    ref = reference_forward(feat_maps_bf16, w_embed, b_embed, gamma, beta)
    assert out.shape == (B, E)
    assert jnp.allclose(out, ref, atol=2e-2, rtol=2e-2), "mismatch vs reference"

    print("KERNEL_OK")
</pallas_src>

<mosaic_0001>
module attributes {stable_mosaic.version = 11 : i64} {
  func.func @pool_embed_kernel(%arg0: i32, %arg1: memref<8x16x256xbf16, #tpu.memory_space<vmem>>, %arg2: memref<256x128xf32, #tpu.memory_space<vmem>>, %arg3: memref<1x128xf32, #tpu.memory_space<vmem>>, %arg4: memref<8x128xf32, #tpu.memory_space<vmem>>) attributes {dimension_semantics = [#tpu.dimension_semantics<parallel>], iteration_bounds = array<i64: 2>, scalar_prefetch = 0 : i64, scratch_operands = 0 : i64, tpu.core_type = #tpu.core_type<tc>, window_params = [{transform_indices = @transform_0, window_bounds = array<i64: 8, 16, 256>}, {pipeline_mode = #tpu.pipeline_mode<synchronous>, transform_indices = @transform_1, window_bounds = array<i64: 256, 128>}, {pipeline_mode = #tpu.pipeline_mode<synchronous>, transform_indices = @transform_2, window_bounds = array<i64: 1, 128>}, {transform_indices = @transform_3, window_bounds = array<i64: 8, 128>}]} {
    %c0 = arith.constant 0 : index
    %c0_0 = arith.constant 0 : index
    %c0_1 = arith.constant 0 : index
    %0 = vector.load %arg1[%c0, %c0_0, %c0_1] : memref<8x16x256xbf16, #tpu.memory_space<vmem>>, vector<8x16x256xbf16>
    %1 = arith.extf %0 : vector<8x16x256xbf16> to vector<8x16x256xf32>
    %cst = arith.constant dense<0.000000e+00> : vector<8x256xf32>
    %2 = vector.multi_reduction <add>, %1, %cst [1] : vector<8x16x256xf32> to vector<8x256xf32>
    %c0_2 = arith.constant 0 : index
    %c0_3 = arith.constant 0 : index
    %3 = vector.load %arg2[%c0_2, %c0_3] : memref<256x128xf32, #tpu.memory_space<vmem>>, vector<256x128xf32>
    %cst_4 = arith.constant dense<0.000000e+00> : vector<8x128xf32>
    %4 = tpu.matmul %2, %3, %cst_4 {dimension_numbers = #tpu.dot_dimension_numbers<[1], [0], [0], [1], [0, 0, 1, 1], [], []>} : vector<8x256xf32>, vector<256x128xf32>, vector<8x128xf32> -> vector<8x128xf32>
    %c0_5 = arith.constant 0 : index
    %c0_6 = arith.constant 0 : index
    %5 = vector.load %arg3[%c0_5, %c0_6] : memref<1x128xf32, #tpu.memory_space<vmem>>, vector<1x128xf32>
    %6 = vector.broadcast %5 : vector<1x128xf32> to vector<8x128xf32>
    %7 = arith.addf %4, %6 : vector<8x128xf32>
    %c0_7 = arith.constant 0 : index
    %c0_8 = arith.constant 0 : index
    %8 = vector.load %arg4[%c0_7, %c0_8] : memref<8x128xf32, #tpu.memory_space<vmem>>, vector<8x128xf32>
    tpu.vector_store %arg4[%c0_7, %c0_8], %7 {strides = array<i32>} : memref<8x128xf32, #tpu.memory_space<vmem>>, vector<8x128xf32>,
    return
  }
  func.func @transform_0(%arg0: i32) -> (i32, i32, i32) {
    %c0_i32 = arith.constant 0 : i32
    %c0_i32_0 = arith.constant 0 : i32
    %c0_i32_1 = arith.constant 0 : i32
    return %arg0, %c0_i32, %c0_i32_0 : i32, i32, i32
  }
  func.func @transform_1(%arg0: i32) -> (i32, i32) {
    %c0_i32 = arith.constant 0 : i32
    %c0_i32_0 = arith.constant 0 : i32
    %c0_i32_1 = arith.constant 0 : i32
    return %c0_i32, %c0_i32_0 : i32, i32
  }
  func.func @transform_2(%arg0: i32) -> (i32, i32) {
    %c0_i32 = arith.constant 0 : i32
    %c0_i32_0 = arith.constant 0 : i32
    %c0_i32_1 = arith.constant 0 : i32
    return %c0_i32, %c0_i32_0 : i32, i32
  }
  func.func @transform_3(%arg0: i32) -> (i32, i32) {
    %c0_i32 = arith.constant 0 : i32
    %c0_i32_0 = arith.constant 0 : i32
    return %arg0, %c0_i32 : i32, i32
  }
}

</mosaic_0001>

<llo_original>
// kernel: tpu_custom_call.1
$region0: #{tpu_custom_call.1}
  #allocation0 [shape = 'u32[]', space=smem, size = 0x4, offset = 0x4, fixed_abs, tag = 'smem constant byte address 0x4 - core index']
  #allocation1 [shape = 'u32[144,128]{1,0:T(1,128)}', space=vmem, size = 0x12000, scoped, tag = 'internal scratch']
  %s0 = inlined_call_operand.hbm [shape: bf16[16,16,256], index: 0, kind: input, shape index: {}]
  %s1 = inlined_call_operand.hbm [shape: f32[256,128], index: 1, kind: input, shape index: {}]
  %s2 = inlined_call_operand.vmem [shape: f32[1,128], index: 2, kind: input, shape index: {}]
  %s3 = inlined_call_operand.hbm [shape: f32[16,128], index: 3, kind: output, shape index: {}]
  %s4 = sld [smem:[#allocation0]]
  $region53: #{tpu_custom_call.1} parent=0
    _
  %s6 = ssub.s32 1, %s4
  %s7 = scalar_select 0, %s6, %s4
  $region1: #{tpu_custom_call.1} parent=0
    #allocation2 [shape = 'u8[131072]{0}', space=vmem, size = 0x20000, scoped, tag = 'input window, operand 0']
    #allocation3 [shape = 's32[2]{0}', space=sflag, size = 0x8, scoped, tag = 'scoped memory for tpu_custom_call.1']
    #allocation4 [shape = 's32[2]{0}', space=sflag, size = 0x8, scoped, tag = 'scoped memory for tpu_custom_call.1']
    #allocation5 [shape = 'u8[131072]{0}', space=vmem, size = 0x20000, scoped, tag = 'input window, operand 1, single buffered']
    #allocation6 [shape = 's32[1]{0}', space=sflag, size = 0x4, scoped, tag = 'scoped memory for tpu_custom_call.1']
    #allocation7 [shape = 'u8[8192]{0}', space=vmem, size = 0x2000, scoped, tag = 'output window, operand 0']
    %8 = vsyncpa [#allocation3], 0
    %s9 = scalar_lea.sflag [#allocation3], 1
    %10 = vsyncpa %s9, 0
    %11 = vsyncpa [#allocation6], 0
    %12 = vsyncpa [#allocation4], 0
    %s13 = scalar_lea.sflag [#allocation4], 1
    %14 = vsyncpa %s13, 0
    loop: start=0, step=1, limit=4
    $region2: #{tpu_custom_call.1} parent=1 // loop_pre_header
      _
    $region3: #{tpu_custom_call.1} parent=1 // loop_header
      %s16 = sphi 0, %s20
      %p17 = scmp.ge.s32.totalorder %s16, 4
      %s26 = sphi 0, %s28
      %s29 = sphi 0, %s26
      %s30 = sphi 0, %s29
      %s46 = sphi 0, %s30
      %s50 = sphi 0, %s50
      %s52 = sphi 0, %s50
      %s53 = sphi 0, %s52
      %s67 = sphi 0, %s53
      %s71 = sphi 0, %s71
      %s73 = sphi 0, %s71
      %s74 = sphi 0, %s73
      %s88 = sphi 0, %s74
      %s94 = sphi 0, %s96
      %s97 = sphi 0, %s94
      %s98 = sphi 0, %s97
      %s114 = sphi 0, %s98
    $region4: #{tpu_custom_call.1} parent=1 // loop_header_branch
      %19 = sbr.rel (%p17) target = $region8
    $region5: #{tpu_custom_call.1} parent=1 // loop_body
      %s21 = ssub.s32 %s16, 1
      %s22 = ssub.s32 %s16, 2
      %s23 = sadd.s32 %s16, 1
      %s24 = ssub.s32 %s16, %s23
      %p25 = scmp.eq.s32.totalorder %s24, 0
      %s27 = sadd.s32 %s26, 1
      %s28 = scalar_select %p25, %s26, %s27
      %p31 = pneg %p25
      %p32 = scmp.eq.s32.totalorder %s16, 1
      %p33 = por %p31, %p32
      %p34 = scmp.ne.s32.totalorder %s26, %s29
      %p35 = scmp.eq.s32.totalorder %s16, 0
      %p36 = por %p34, %p35
      %p37 = scmp.ne.s32.totalorder %s26, %s29
      %p38 = scmp.eq.s32.totalorder %s21, 1
      %p39 = por %p37, %p38
      %p40 = scmp.ne.s32.totalorder %s29, %s30
      %p41 = scmp.eq.s32.totalorder %s21, 0
      %p42 = por %p40, %p41
      %p43 = scmp.ne.s32.totalorder %s29, %s30
      %p44 = scmp.eq.s32.totalorder %s22, 1
      %p45 = por %p43, %p44
      %p47 = scmp.ne.s32.totalorder %s30, %s46
      %p48 = scmp.eq.s32.totalorder %s22, 0
      %p49 = por %p47, %p48
      %s51 = sadd.s32 %s50, 1
      %p54 = scmp.eq.s32.totalorder %s16, 1
      %p55 = scmp.ne.s32.totalorder %s50, %s52
      %p56 = scmp.eq.s32.totalorder %s16, 0
      %p57 = por %p55, %p56
      %p58 = scmp.ne.s32.totalorder %s50, %s52
      %p59 = scmp.eq.s32.totalorder %s21, 1
      %p60 = por %p58, %p59
      %p61 = scmp.ne.s32.totalorder %s52, %s53
      %p62 = scmp.eq.s32.totalorder %s21, 0
      %p63 = por %p61, %p62
      %p64 = scmp.ne.s32.totalorder %s52, %s53
      %p65 = scmp.eq.s32.totalorder %s22, 1
      %p66 = por %p64, %p65
      %p68 = scmp.ne.s32.totalorder %s53, %s67
      %p69 = scmp.eq.s32.totalorder %s22, 0
      %p70 = por %p68, %p69
      %s72 = sadd.s32 %s71, 1
      %p75 = scmp.eq.s32.totalorder %s16, 1
      %p76 = scmp.ne.s32.totalorder %s71, %s73
      %p77 = scmp.eq.s32.totalorder %s16, 0
      %p78 = por %p76, %p77
      %p79 = scmp.ne.s32.totalorder %s71, %s73
      %p80 = scmp.eq.s32.totalorder %s21, 1
      %p81 = por %p79, %p80
      %p82 = scmp.ne.s32.totalorder %s73, %s74
      %p83 = scmp.eq.s32.totalorder %s21, 0
      %p84 = por %p82, %p83
      %p85 = scmp.ne.s32.totalorder %s73, %s74
      %p86 = scmp.eq.s32.totalorder %s22, 1
      %p87 = por %p85, %p86
      %p89 = scmp.ne.s32.totalorder %s74, %s88
      %p90 = scmp.eq.s32.totalorder %s22, 0
      %p91 = por %p89, %p90
      %s92 = ssub.s32 %s16, %s23
      %p93 = scmp.eq.s32.totalorder %s92, 0
      %s95 = sadd.s32 %s94, 1
      %s96 = scalar_select %p93, %s94, %s95
      %p99 = pneg %p93
      %p100 = scmp.eq.s32.totalorder %s16, 1
      %p101 = por %p99, %p100
      %p102 = scmp.ne.s32.totalorder %s94, %s97
      %p103 = scmp.eq.s32.totalorder %s16, 0
      %p104 = por %p102, %p103
      %p105 = scmp.ne.s32.totalorder %s94, %s97
      %p106 = scmp.eq.s32.totalorder %s21, 1
      %p107 = por %p105, %p106
      %p108 = scmp.ne.s32.totalorder %s97, %s98
      %p109 = scmp.eq.s32.totalorder %s21, 0
      %p110 = por %p108, %p109
      %p111 = scmp.ne.s32.totalorder %s97, %s98
      %p112 = scmp.eq.s32.totalorder %s22, 1
      %p113 = por %p111, %p112
      %p115 = scmp.ne.s32.totalorder %s98, %s114
      %p116 = scmp.eq.s32.totalorder %s22, 0
      %p117 = por %p115, %p116
      %p118 = scmp.le.s32.totalorder 1, %s16
      %p119 = scmp.lt.s32.totalorder %s16, 3
      %p120 = pnand %p118, %p119
      %p121 = pneg %p120
      // Predicated region
      $region9: #{tpu_custom_call.1} parent=5 // pred_check
        _
      $region10: #{tpu_custom_call.1} parent=5 // pred_check_branch
        %123 = sbr.rel (%p120) target = $region12
      $region11: #{tpu_custom_call.1} parent=5 // pred_region
        %s124 = ssub.s32 %s16, 1
        // Predicated region
        $region13: #{tpu_custom_call.1} parent=11 // pred_check
          %p125 = pneg %p63
        $region14: #{tpu_custom_call.1} parent=11 // pred_check_branch
          %127 = sbr.rel (%p125) target = $region16
        $region15: #{tpu_custom_call.1} parent=11 // pred_region
          %s129 = ssub.s32 4096, 4096
          %130 = vsyncadd [#allocation6], %s129
          %s131 = sshll.u32 [#allocation5], 4
          %s132 = int_to_ptr.vmem [resolvable:$true] %s131
          %137 = dma.hbm_to_vmem [thread:$0]  %s1, 4096, %s132, [#allocation6], 128, 128, 8
        $region16: #{tpu_custom_call.1} parent=11 // pred_fallthru
          _
        // Predicated region
        $region17: #{tpu_custom_call.1} parent=11 // pred_check
          %p138 = pneg %p84
        $region18: #{tpu_custom_call.1} parent=11 // pred_check_branch
          %140 = sbr.rel (%p138) target = $region20
        $region19: #{tpu_custom_call.1} parent=11 // pred_region
          _
        $region20: #{tpu_custom_call.1} parent=11 // pred_fallthru
          _
      $region12: #{tpu_custom_call.1} parent=5 // pred_fallthru
        _
      %p141 = scmp.lt.s32.totalorder %s16, 2
      // Predicated region
      $region21: #{tpu_custom_call.1} parent=5 // pred_check
        %p142 = pneg %p141
      $region22: #{tpu_custom_call.1} parent=5 // pred_check_branch
        %144 = sbr.rel (%p142) target = $region24
      $region23: #{tpu_custom_call.1} parent=5 // pred_region
        // Predicated region
        $region25: #{tpu_custom_call.1} parent=23 // pred_check
          %p145 = pneg %p36
        $region26: #{tpu_custom_call.1} parent=23 // pred_check_branch
          %147 = sbr.rel (%p145) target = $region28
        $region27: #{tpu_custom_call.1} parent=23 // pred_region
          %s148 = sand.u32 %s26, 1
          %s149 = scalar_lea.sflag [#allocation3], %s148
          %s150 = sand.u32 %s26, 1
          %s151 = smul.addr %s150, 128
          %s152 = scalar_lea.vmem [#allocation2], %s151
          %s153 = smul.u32 8, %s16
          %s155 = ssub.s32 2048, 2048
          %156 = vsyncadd %s149, %s155
          %s157 = smul.addr %s153, 4
          %s158 = smul.addr %s157, 64
          %s159 = scalar_lea.hbm %s0, %s158
          %s160 = sshll.u32 %s152, 4
          %s161 = int_to_ptr.vmem [resolvable:$true] %s160
          %166 = dma.hbm_to_vmem [thread:$0]  %s159, 2048, %s161, %s149, 128, 128, 8
        $region28: #{tpu_custom_call.1} parent=23 // pred_fallthru
          _
      $region24: #{tpu_custom_call.1} parent=5 // pred_fallthru
        _
      %p167 = scmp.le.s32.totalorder 1, %s16
      %p168 = scmp.lt.s32.totalorder %s16, 3
      %p169 = pnand %p167, %p168
      %p170 = pneg %p169
      // Predicated region
      $region29: #{tpu_custom_call.1} parent=5 // pred_check
        _
      $region30: #{tpu_custom_call.1} parent=5 // pred_check_branch
        %172 = sbr.rel (%p169) target = $region32
      $region31: #{tpu_custom_call.1} parent=5 // pred_region
        %s173 = ssub.s32 %s16, 1
        %s174 = sand.u32 %s29, 1
        %s175 = scalar_lea.sflag [#allocation3], %s174
        %s176 = sand.u32 %s29, 1
        %s177 = smul.addr %s176, 128
        %s178 = scalar_lea.vmem [#allocation2], %s177
        // Predicated region
        $region33: #{tpu_custom_call.1} parent=31 // pred_check
          %p179 = pneg %p42
        $region34: #{tpu_custom_call.1} parent=31 // pred_check_branch
          %181 = sbr.rel (%p179) target = $region36
        $region35: #{tpu_custom_call.1} parent=31 // pred_region
          %182 = dma.done %s175, 2048
        $region36: #{tpu_custom_call.1} parent=31 // pred_fallthru
          _
        // Predicated region
        $region37: #{tpu_custom_call.1} parent=31 // pred_check
          %p183 = pneg %p63
        $region38: #{tpu_custom_call.1} parent=31 // pred_check_branch
          %185 = sbr.rel (%p183) target = $region40
        $region39: #{tpu_custom_call.1} parent=31 // pred_region
          %186 = dma.done [#allocation6], 4096
        $region40: #{tpu_custom_call.1} parent=31 // pred_fallthru
          _
        %s187 = sand.u32 %s29, 1
        %s188 = scalar_lea.sflag [#allocation3], %s187
        %s189 = sand.u32 %s29, 1
        %s190 = smul.addr %s189, 128
        %s191 = scalar_lea.vmem [#allocation2], %s190
        %p192 = pneg %p42
        %p193 = pneg %p39
        %p194 = pneg %p63
        %p195 = pneg %p60
        %p196 = pneg %p84
        %p197 = pneg %p81
        %p198 = pneg %p110
        %p199 = pneg %p107
        %s200 = sand.u32 %s97, 1
        %s201 = scalar_lea.sflag [#allocation4], %s200
        %s202 = sand.u32 %s97, 1
        %s203 = smul.addr %s202, 8
        %s204 = scalar_lea.vmem [#allocation7], %s203
        %s205 = smul.u32 8, %s21
        %v206 = vld [vmem:[%s178] sm:$0xff]
        %v207 = vld [vmem:[%s178 + $0x8] sm:$0xff]
        %v208 = vld [vmem:[%s178 + $0x10] sm:$0xff]
        %v209 = vld [vmem:[%s178 + $0x18] sm:$0xff]
        %v210 = vld [vmem:[%s178 + $0x20] sm:$0xff]
        %v211 = vld [vmem:[%s178 + $0x28] sm:$0xff]
        %v212 = vld [vmem:[%s178 + $0x30] sm:$0xff]
        %v213 = vld [vmem:[%s178 + $0x38] sm:$0xff]
        %v214 = vld [vmem:[%s178 + $0x40] sm:$0xff]
        %v215 = vld [vmem:[%s178 + $0x48] sm:$0xff]
        %v216 = vld [vmem:[%s178 + $0x50] sm:$0xff]
        %v217 = vld [vmem:[%s178 + $0x58] sm:$0xff]
        %v218 = vld [vmem:[%s178 + $0x60] sm:$0xff]
        %v219 = vld [vmem:[%s178 + $0x68] sm:$0xff]
        %v220 = vld [vmem:[%s178 + $0x70] sm:$0xff]
        %v221 = vld [vmem:[%s178 + $0x78] sm:$0xff]
        %v222 = vunpack.c.l.bf16 %v206
        %v223 = vunpack.c.h.bf16 %v206
        %v224 = vunpack.c.l.bf16 %v207
        %v225 = vunpack.c.h.bf16 %v207
        %v226 = vunpack.c.l.bf16 %v208
        %v227 = vunpack.c.h.bf16 %v208
        %v228 = vunpack.c.l.bf16 %v209
        %v229 = vunpack.c.h.bf16 %v209
        %v230 = vunpack.c.l.bf16 %v210
        %v231 = vunpack.c.h.bf16 %v210
        %v232 = vunpack.c.l.bf16 %v211
        %v233 = vunpack.c.h.bf16 %v211
        %v234 = vunpack.c.l.bf16 %v212
        %v235 = vunpack.c.h.bf16 %v212
        %v236 = vunpack.c.l.bf16 %v213
        %v237 = vunpack.c.h.bf16 %v213
        %v238 = vunpack.c.l.bf16 %v214
        %v239 = vunpack.c.h.bf16 %v214
        %v240 = vunpack.c.l.bf16 %v215
        %v241 = vunpack.c.h.bf16 %v215
        %v242 = vunpack.c.l.bf16 %v216
        %v243 = vunpack.c.h.bf16 %v216
        %v244 = vunpack.c.l.bf16 %v217
        %v245 = vunpack.c.h.bf16 %v217
        %v246 = vunpack.c.l.bf16 %v218
        %v247 = vunpack.c.h.bf16 %v218
        %v248 = vunpack.c.l.bf16 %v219
        %v249 = vunpack.c.h.bf16 %v219
        %v250 = vunpack.c.l.bf16 %v220
        %v251 = vunpack.c.h.bf16 %v220
        %v252 = vunpack.c.l.bf16 %v221
        %v253 = vunpack.c.h.bf16 %v221
        %v254 = vadd.f32 %v222, %v224
        %v255 = vrot.slane %v254, 4
        %v256 = vadd.f32 %v254, %v255
        %v257 = vrot.slane %v256, 2
        %v258 = vadd.f32 %v256, %v257
        %v259 = vrot.slane %v258, 1
        %v260 = vadd.f32 %v258, %v259
        %v261 = vadd.f32 %v223, %v225
        %v262 = vrot.slane %v261, 4
        %v263 = vadd.f32 %v261, %v262
        %v264 = vrot.slane %v263, 2
        %v265 = vadd.f32 %v263, %v264
        %v266 = vrot.slane %v265, 1
        %v267 = vadd.f32 %v265, %v266
        %v268 = vadd.f32 %v226, %v228
        %v269 = vrot.slane %v268, 4
        %v270 = vadd.f32 %v268, %v269
        %v271 = vrot.slane %v270, 2
        %v272 = vadd.f32 %v270, %v271
        %v273 = vrot.slane %v272, 1
        %v274 = vadd.f32 %v272, %v273
        %v275 = vadd.f32 %v227, %v229
        %v276 = vrot.slane %v275, 4
        %v277 = vadd.f32 %v275, %v276
        %v278 = vrot.slane %v277, 2
        %v279 = vadd.f32 %v277, %v278
        %v280 = vrot.slane %v279, 1
        %v281 = vadd.f32 %v279, %v280
        %v282 = vadd.f32 %v230, %v232
        %v283 = vrot.slane %v282, 4
        %v284 = vadd.f32 %v282, %v283
        %v285 = vrot.slane %v284, 2
        %v286 = vadd.f32 %v284, %v285
        %v287 = vrot.slane %v286, 1
        %v288 = vadd.f32 %v286, %v287
        %v289 = vadd.f32 %v231, %v233
        %v290 = vrot.slane %v289, 4
        %v291 = vadd.f32 %v289, %v290
        %v292 = vrot.slane %v291, 2
        %v293 = vadd.f32 %v291, %v292
        %v294 = vrot.slane %v293, 1
        %v295 = vadd.f32 %v293, %v294
        %v296 = vadd.f32 %v234, %v236
        %v297 = vrot.slane %v296, 4
        %v298 = vadd.f32 %v296, %v297
        %v299 = vrot.slane %v298, 2
        %v300 = vadd.f32 %v298, %v299
        %v301 = vrot.slane %v300, 1
        %v302 = vadd.f32 %v300, %v301
        %v303 = vadd.f32 %v235, %v237
        %v304 = vrot.slane %v303, 4
        %v305 = vadd.f32 %v303, %v304
        %v306 = vrot.slane %v305, 2
        %v307 = vadd.f32 %v305, %v306
        %v308 = vrot.slane %v307, 1
        %v309 = vadd.f32 %v307, %v308
        %v310 = vadd.f32 %v238, %v240
        %v311 = vrot.slane %v310, 4
        %v312 = vadd.f32 %v310, %v311
        %v313 = vrot.slane %v312, 2
        %v314 = vadd.f32 %v312, %v313
        %v315 = vrot.slane %v314, 1
        %v316 = vadd.f32 %v314, %v315
        %v317 = vadd.f32 %v239, %v241
        %v318 = vrot.slane %v317, 4
        %v319 = vadd.f32 %v317, %v318
        %v320 = vrot.slane %v319, 2
        %v321 = vadd.f32 %v319, %v320
        %v322 = vrot.slane %v321, 1
        %v323 = vadd.f32 %v321, %v322
        %v324 = vadd.f32 %v242, %v244
        %v325 = vrot.slane %v324, 4
        %v326 = vadd.f32 %v324, %v325
        %v327 = vrot.slane %v326, 2
        %v328 = vadd.f32 %v326, %v327
        %v329 = vrot.slane %v328, 1
        %v330 = vadd.f32 %v328, %v329
        %v331 = vadd.f32 %v243, %v245
        %v332 = vrot.slane %v331, 4
        %v333 = vadd.f32 %v331, %v332
        %v334 = vrot.slane %v333, 2
        %v335 = vadd.f32 %v333, %v334
        %v336 = vrot.slane %v335, 1
        %v337 = vadd.f32 %v335, %v336
        %v338 = vadd.f32 %v246, %v248
        %v339 = vrot.slane %v338, 4
        %v340 = vadd.f32 %v338, %v339
        %v341 = vrot.slane %v340, 2
        %v342 = vadd.f32 %v340, %v341
        %v343 = vrot.slane %v342, 1
        %v344 = vadd.f32 %v342, %v343
        %v345 = vadd.f32 %v247, %v249
        %v346 = vrot.slane %v345, 4
        %v347 = vadd.f32 %v345, %v346
        %v348 = vrot.slane %v347, 2
        %v349 = vadd.f32 %v347, %v348
        %v350 = vrot.slane %v349, 1
        %v351 = vadd.f32 %v349, %v350
        %v352 = vadd.f32 %v250, %v252
        %v353 = vrot.slane %v352, 4
        %v354 = vadd.f32 %v352, %v353
        %v355 = vrot.slane %v354, 2
        %v356 = vadd.f32 %v354, %v355
        %v357 = vrot.slane %v356, 1
        %v358 = vadd.f32 %v356, %v357
        %v359 = vadd.f32 %v251, %v253
        %v360 = vrot.slane %v359, 4
        %v361 = vadd.f32 %v359, %v360
        %v362 = vrot.slane %v361, 2
        %v363 = vadd.f32 %v361, %v362
        %v364 = vrot.slane %v363, 1
        %v365 = vadd.f32 %v363, %v364
        %v366 = vld [vmem:[#allocation5] sm:$0xff]
        %v367 = vld [vmem:[#allocation5 + $0x8] sm:$0xff]
        %v368 = vld [vmem:[#allocation5 + $0x10] sm:$0xff]
        %v369 = vld [vmem:[#allocation5 + $0x18] sm:$0xff]
        %v370 = vld [vmem:[#allocation5 + $0x20] sm:$0xff]
        %v371 = vld [vmem:[#allocation5 + $0x28] sm:$0xff]
        %v372 = vld [vmem:[#allocation5 + $0x30] sm:$0xff]
        %v373 = vld [vmem:[#allocation5 + $0x38] sm:$0xff]
        %v374 = vld [vmem:[#allocation5 + $0x40] sm:$0xff]
        %v375 = vld [vmem:[#allocation5 + $0x48] sm:$0xff]
        %v376 = vld [vmem:[#allocation5 + $0x50] sm:$0xff]
        %v377 = vld [vmem:[#allocation5 + $0x58] sm:$0xff]
        %v378 = vld [vmem:[#allocation5 + $0x60] sm:$0xff]
        %v379 = vld [vmem:[#allocation5 + $0x68] sm:$0xff]
        %v380 = vld [vmem:[#allocation5 + $0x70] sm:$0xff]
        %v381 = vld [vmem:[#allocation5 + $0x78] sm:$0xff]
        %v382 = vld [vmem:[#allocation5 + $0x80] sm:$0xff]
        %v383 = vld [vmem:[#allocation5 + $0x88] sm:$0xff]
        %v384 = vld [vmem:[#allocation5 + $0x90] sm:$0xff]
        %v385 = vld [vmem:[#allocation5 + $0x98] sm:$0xff]
        %v386 = vld [vmem:[#allocation5 + $0xa0] sm:$0xff]
        %v387 = vld [vmem:[#allocation5 + $0xa8] sm:$0xff]
        %v388 = vld [vmem:[#allocation5 + $0xb0] sm:$0xff]
        %v389 = vld [vmem:[#allocation5 + $0xb8] sm:$0xff]
        %v390 = vld [vmem:[#allocation5 + $0xc0] sm:$0xff]
        %v391 = vld [vmem:[#allocation5 + $0xc8] sm:$0xff]
        %v392 = vld [vmem:[#allocation5 + $0xd0] sm:$0xff]
        %v393 = vld [vmem:[#allocation5 + $0xd8] sm:$0xff]
        %v394 = vld [vmem:[#allocation5 + $0xe0] sm:$0xff]
        %v395 = vld [vmem:[#allocation5 + $0xe8] sm:$0xff]
        %v396 = vld [vmem:[#allocation5 + $0xf0] sm:$0xff]
        %v397 = vld [vmem:[#allocation5 + $0xf8] sm:$0xff]
        %v398 = vld [vmem:[%s2] sm:$0x1]
        %v400 = vlaneseq
        %v401 = vshrl.u32 %v400, 7
        %v402 = vsub.s32 0, %v401
        %v403 = vrot.slane %v398, %v402
        %vm421 = vcmask 1041409
        %v422 = vsel %vm421, %v274, %v260
        %vm423 = vcmask 1042434
        %v424 = vsel %vm423, %v288, %v422
        %vm425 = vcmask 1043459
        %v426 = vsel %vm425, %v302, %v424
        %vm427 = vcmask 1044484
        %v428 = vsel %vm427, %v316, %v426
        %vm429 = vcmask 1045509
        %v430 = vsel %vm429, %v330, %v428
        %vm431 = vcmask 1046534
        %v432 = vsel %vm431, %v344, %v430
        %vm433 = vcmask 1047559
        %v434 = vsel %vm433, %v358, %v432
        %v435 = vsel %vm421, %v281, %v267
        %v436 = vsel %vm423, %v295, %v435
        %v437 = vsel %vm425, %v309, %v436
        %v438 = vsel %vm427, %v323, %v437
        %v439 = vsel %vm429, %v337, %v438
        %v440 = vsel %vm431, %v351, %v439
        %v441 = vsel %vm433, %v365, %v440
        %444 = vmatprep.subr.mxu0 0.0
        %445 = vmatpush1.msra.mxu0 %v366
        %446 = vmatprep.subr.mxu0 0.0
        %447 = vmatpush1.msra.mxu0 %v367
        %448 = vmatprep.subr.mxu0 0.0
        %449 = vmatpush1.msra.mxu0 %v368
        %450 = vmatprep.subr.mxu0 0.0
        %451 = vmatpush1.msra.mxu0 %v369
        %452 = vmatprep.subr.mxu0 0.0
        %453 = vmatpush1.msra.mxu0 %v370
        %454 = vmatprep.subr.mxu0 0.0
        %455 = vmatpush1.msra.mxu0 %v371
        %456 = vmatprep.subr.mxu0 0.0
        %457 = vmatpush1.msra.mxu0 %v372
        %458 = vmatprep.subr.mxu0 0.0
        %459 = vmatpush1.msra.mxu0 %v373
        %460 = vmatprep.subr.mxu0 0.0
        %461 = vmatpush1.msra.mxu0 %v374
        %462 = vmatprep.subr.mxu0 0.0
        %463 = vmatpush1.msra.mxu0 %v375
        %464 = vmatprep.subr.mxu0 0.0
        %465 = vmatpush1.msra.mxu0 %v376
        %466 = vmatprep.subr.mxu0 0.0
        %467 = vmatpush1.msra.mxu0 %v377
        %468 = vmatprep.subr.mxu0 0.0
        %469 = vmatpush1.msra.mxu0 %v378
        %470 = vmatprep.subr.mxu0 0.0
        %471 = vmatpush1.msra.mxu0 %v379
        %472 = vmatprep.subr.mxu0 0.0
        %473 = vmatpush1.msra.mxu0 %v380
        %474 = vmatprep.subr.mxu0 0.0
        %475 = vmatpush1.msra.mxu0 %v381
        %476 = vmatprep.subr.mxu0 0.0
        %477 = vmatpush1.msra.mxu0 %v382
        %478 = vmatprep.subr.mxu0 0.0
        %479 = vmatpush1.msra.mxu0 %v383
        %480 = vmatprep.subr.mxu0 0.0
        %481 = vmatpush1.msra.mxu0 %v384
        %482 = vmatprep.subr.mxu0 0.0
        %483 = vmatpush1.msra.mxu0 %v385
        %484 = vmatprep.subr.mxu0 0.0
        %485 = vmatpush1.msra.mxu0 %v386
        %486 = vmatprep.subr.mxu0 0.0
        %487 = vmatpush1.msra.mxu0 %v387
        %488 = vmatprep.subr.mxu0 0.0
        %489 = vmatpush1.msra.mxu0 %v388
        %490 = vmatprep.subr.mxu0 0.0
        %491 = vmatpush1.msra.mxu0 %v389
        %492 = vmatprep.subr.mxu0 0.0
        %493 = vmatpush1.msra.mxu0 %v390
        %494 = vmatprep.subr.mxu0 0.0
        %495 = vmatpush1.msra.mxu0 %v391
        %496 = vmatprep.subr.mxu0 0.0
        %497 = vmatpush1.msra.mxu0 %v392
        %498 = vmatprep.subr.mxu0 0.0
        %499 = vmatpush1.msra.mxu0 %v393
        %500 = vmatprep.subr.mxu0 0.0
        %501 = vmatpush1.msra.mxu0 %v394
        %502 = vmatprep.subr.mxu0 0.0
        %503 = vmatpush1.msra.mxu0 %v395
        %504 = vmatprep.subr.mxu0 0.0
        %505 = vmatpush1.msra.mxu0 %v396
        %506 = vmatprep.subr.mxu0 0.0
        %507 = vmatpush1.msra.mxu0 %v397
        %508 = vmatprep.mubr.f32.mxu0 %v441
        %509 = vmatmul.mubr.f32.gmra.mrb[0].mxu0 %v434
        %v510 = vpop.f32.mrb[0].mxu0
        %v511 = vadd.f32 %v403, %v510
        %v512 = vpop.f32.mrb[0].mxu0
        %513 = vdwg.mxu0
        %514 = vst [vmem:[%s204] sm:$0xff] %v511
        %s515 = sand.u32 %s97, 1
        %s516 = scalar_lea.sflag [#allocation4], %s515
        %s517 = sand.u32 %s97, 1
        %s518 = smul.addr %s517, 8
        %s519 = scalar_lea.vmem [#allocation7], %s518
        // Predicated region
        $region41: #{tpu_custom_call.1} parent=31 // pred_check
          %p520 = pneg %p107
        $region42: #{tpu_custom_call.1} parent=31 // pred_check_branch
          %522 = sbr.rel (%p520) target = $region44
        $region43: #{tpu_custom_call.1} parent=31 // pred_region
          %s524 = ssub.s32 128, 128
          %525 = vsyncadd %s516, %s524
          %s526 = smul.addr %s21, 128
          %s527 = scalar_lea.hbm %s3, %s526
          %s529 = sshll.u32 %s519, 4
          %s530 = int_to_ptr.vmem [resolvable:$true] %s529
          %532 = dma.vmem_to_hbm [thread:$0]  %s530, 128, %s527, %s516
        $region44: #{tpu_custom_call.1} parent=31 // pred_fallthru
          _
      $region32: #{tpu_custom_call.1} parent=5 // pred_fallthru
        _
      %p533 = scmp.le.s32.totalorder 2, %s16
      // Predicated region
      $region45: #{tpu_custom_call.1} parent=5 // pred_check
        %p534 = pneg %p533
      $region46: #{tpu_custom_call.1} parent=5 // pred_check_branch
        %536 = sbr.rel (%p534) target = $region48
      $region47: #{tpu_custom_call.1} parent=5 // pred_region
        %s537 = ssub.s32 %s16, 2
        // Predicated region
        $region49: #{tpu_custom_call.1} parent=47 // pred_check
          %p538 = pneg %p113
        $region50: #{tpu_custom_call.1} parent=47 // pred_check_branch
          %540 = sbr.rel (%p538) target = $region52
        $region51: #{tpu_custom_call.1} parent=47 // pred_region
          %s541 = sand.u32 %s98, 1
          %s542 = scalar_lea.sflag [#allocation4], %s541
          %s543 = sand.u32 %s98, 1
          %s544 = smul.addr %s543, 8
          %s545 = scalar_lea.vmem [#allocation7], %s544
          %546 = dma.done %s542, 128
        $region52: #{tpu_custom_call.1} parent=47 // pred_fallthru
          _
      $region48: #{tpu_custom_call.1} parent=5 // pred_fallthru
        _
    $region6: #{tpu_custom_call.1} parent=1 // loop_footer
      %s20 = sadd.s32 1, %s16
    $region7: #{tpu_custom_call.1} parent=1 // loop_footer_branch
      %15 = sbr.rel target = $region3
    $region8: #{tpu_custom_call.1} parent=1 // loop_exit
      _
    %547 = vsyncpa [#allocation3], 1
    %s548 = scalar_lea.sflag [#allocation3], 1
    %549 = vsyncpa %s548, 1
    %550 = vsyncpa [#allocation6], 1
    %551 = vsyncpa [#allocation4], 1
    %s552 = scalar_lea.sflag [#allocation4], 1
    %553 = vsyncpa %s552, 1

</llo_original>
